<compile_context>
chip_gen: v5e
topology: v5e:2x2
jax: 0.10.0
libtpu: 0.0.40
codegen_flags: <defaults>
</compile_context>

<pallas_src>
import functools

import jax
import jax.numpy as jnp
from jax.experimental import pallas as pl
from jax.experimental.pallas import tpu as pltpu

EPS = 1e-12


def _gem_kernel(p_ref, x_ref, o_ref, *, hw):
    # p_ref: SMEM (1,) f32          -- learnable power p
    # x_ref: VMEM (TILE_NC, HW)     -- (n, c) rows on sublanes, spatial on lanes
    # o_ref: VMEM (TILE_NC, 1)      -- pooled value per (n, c) row
    p = p_ref[0]
    x = x_ref[...].astype(jnp.float32)
    xc = jnp.maximum(x, EPS)                        # clamp(min=eps)
    # x^p for x > 0 via EUP log+exp.
    # TODO(synk): bf16 exp/log on v6e/v7x would ~2x EUP throughput but carries
    # ~0.5-1% per-element error; kept f32 (and irrelevant while HBM-bound).
    xp = jnp.exp(p * jnp.log(xc))
    s = jnp.sum(xp, axis=-1, keepdims=True)         # (TILE_NC, 1) XLU lane-reduce
    m = s * (1.0 / hw)                              # true-H*W mean (avg_pool2d)
    o_ref[...] = jnp.exp(jnp.log(m) * (1.0 / p)).astype(o_ref.dtype)  # m^(1/p)


def _pick_tile_nc(nc, hw, budget_bytes=8 << 20):
    """Largest sublane tile (multiple of 8) whose double-buffered f32 input
    footprint stays under `budget_bytes`; falls back to full N*C when small."""
    hw_pad = -(-hw // 128) * 128                    # lane padding of the block
    max_rows = budget_bytes // (2 * hw_pad * 4)     # double-buffered f32 rows
    tile = max(8, (max_rows // 8) * 8)
    if nc <= tile:
        return nc                                   # single full-extent block
    return min(1024, tile)                          # multiple of 8


def gem_pool(x, p):
    """x: (N, C, H, W) array; p: (1,) f32 parameter. Returns (N, C)."""
    N, C, H, W = x.shape
    NC, HW = N * C, H * W
    # Free dim-merge reshape: no data movement, unlike the old transpose path.
    x2d = x.reshape(NC, HW)
    tile = _pick_tile_nc(NC, HW)
    grid = (pl.cdiv(NC, tile),)
    # TODO(synk): for very large H*W (>= ~64K) add a second "arbitrary" grid
    # axis over H*W with an f32 accumulator scratch; unnecessary for pooling
    # tails (7x7 / 14x14 / 16x16).
    out = pl.pallas_call(
        functools.partial(_gem_kernel, hw=float(HW)),
        out_shape=jax.ShapeDtypeStruct((NC, 1), x.dtype),
        grid_spec=pltpu.PrefetchScalarGridSpec(
            num_scalar_prefetch=0,
            grid=grid,
            in_specs=[
                pl.BlockSpec(memory_space=pltpu.MemorySpace.SMEM),   # p scalar
                pl.BlockSpec((tile, HW), lambda i: (i, 0)),          # x rows
            ],
            out_specs=pl.BlockSpec((tile, 1), lambda i: (i, 0)),
        ),
        compiler_params=pltpu.CompilerParams(
            dimension_semantics=("parallel",)),
    )(p, x2d)
    return out.reshape(N, C)


def gem_ref(x, p):
    """Pure-JAX reference for the PyTorch forward."""
    xc = jnp.maximum(x.astype(jnp.float32), EPS)
    pooled = jnp.mean(xc ** p[0], axis=(-2, -1))
    return (pooled ** (1.0 / p[0])).astype(x.dtype)


if __name__ == "__main__":
    key = jax.random.PRNGKey(0)
    N, C, H, W = 2, 4, 16, 16
    x = jax.random.normal(key, (N, C, H, W), dtype=jnp.float32)
    # GeM.__init__: self.p = Parameter(torch.ones(1) * 3)  (deterministic)
    p = jnp.ones((1,), dtype=jnp.float32) * 3.0

    out = gem_pool(x, p)
    jax.block_until_ready(out)

    ref = gem_ref(x, p)
    assert out.shape == (N, C), out.shape
    assert jnp.allclose(out, ref, atol=1e-5, rtol=1e-5), (out, ref)
    print("KERNEL_OK")
</pallas_src>

<mosaic_0001>
module attributes {stable_mosaic.version = 11 : i64} {
  func.func @_gem_kernel(%arg0: i32, %arg1: memref<1xf32, #tpu.memory_space<smem>>, %arg2: memref<8x256xf32, #tpu.memory_space<vmem>>, %arg3: memref<8x1xf32, #tpu.memory_space<vmem>>) attributes {dimension_semantics = [#tpu.dimension_semantics<parallel>], iteration_bounds = array<i64: 1>, scalar_prefetch = 0 : i64, scratch_operands = 0 : i64, tpu.core_type = #tpu.core_type<tc>, window_params = [{transform_indices = @transform_0, window_bounds = array<i64: 1>}, {transform_indices = @transform_1, window_bounds = array<i64: 8, 256>}, {transform_indices = @transform_2, window_bounds = array<i64: 8, 1>}]} {
    %c0 = arith.constant 0 : index
    %0 = memref.load %arg1[%c0] : memref<1xf32, #tpu.memory_space<smem>>
    %c0_0 = arith.constant 0 : index
    %c0_1 = arith.constant 0 : index
    %1 = vector.load %arg2[%c0_0, %c0_1] : memref<8x256xf32, #tpu.memory_space<vmem>>, vector<8x256xf32>
    %cst = arith.constant 9.99999996E-13 : f32
    %2 = vector.broadcast %cst : f32 to vector<8x256xf32>
    %3 = arith.maximumf %1, %2 : vector<8x256xf32>
    %4 = math.log %3 : vector<8x256xf32>
    %5 = vector.broadcast %0 : f32 to vector<8x256xf32>
    %6 = arith.mulf %5, %4 : vector<8x256xf32>
    %7 = math.exp %6 : vector<8x256xf32>
    %cst_2 = arith.constant dense<0.000000e+00> : vector<8xf32>
    %8 = vector.multi_reduction <add>, %7, %cst_2 [1] : vector<8x256xf32> to vector<8xf32>
    %9 = vector.shape_cast %8 : vector<8xf32> to vector<8x1xf32>
    %cst_3 = arith.constant 3.906250e-03 : f32
    %10 = vector.broadcast %cst_3 : f32 to vector<8x1xf32>
    %11 = arith.mulf %9, %10 : vector<8x1xf32>
    %12 = math.log %11 : vector<8x1xf32>
    %cst_4 = arith.constant 1.000000e+00 : f32
    %13 = arith.divf %cst_4, %0 : f32
    %14 = vector.broadcast %13 : f32 to vector<8x1xf32>
    %15 = arith.mulf %12, %14 : vector<8x1xf32>
    %16 = math.exp %15 : vector<8x1xf32>
    %c0_5 = arith.constant 0 : index
    %c0_6 = arith.constant 0 : index
    %17 = vector.load %arg3[%c0_5, %c0_6] : memref<8x1xf32, #tpu.memory_space<vmem>>, vector<8x1xf32>
    tpu.vector_store %arg3[%c0_5, %c0_6], %16 {strides = array<i32>} : memref<8x1xf32, #tpu.memory_space<vmem>>, vector<8x1xf32>,
    return
  }
  func.func @transform_0(%arg0: i32) -> i32 {
    %c0_i32 = arith.constant 0 : i32
    %c0_i32_0 = arith.constant 0 : i32
    return %c0_i32 : i32
  }
  func.func @transform_1(%arg0: i32) -> (i32, i32) {
    %c0_i32 = arith.constant 0 : i32
    %c0_i32_0 = arith.constant 0 : i32
    return %arg0, %c0_i32 : i32, i32
  }
  func.func @transform_2(%arg0: i32) -> (i32, i32) {
    %c0_i32 = arith.constant 0 : i32
    %c0_i32_0 = arith.constant 0 : i32
    return %arg0, %c0_i32 : i32, i32
  }
}

</mosaic_0001>

<llo_original>
// kernel: tpu_custom_call.1
$region0: #{tpu_custom_call.1}
  #allocation0 [shape = 'u32[]', space=smem, size = 0x4, offset = 0x4, fixed_abs, tag = 'smem constant byte address 0x4 - core index']
  #allocation1 [shape = 'u32[72,128]{1,0:T(1,128)}', space=vmem, size = 0x9000, scoped, tag = 'internal scratch']
  #allocation2 [shape = 'f32[1]{0:T(128)S(6)}', space=smem, size = 0x200, scoped, tag = 'scoped memory for tpu_custom_call.1']
  %s0 = inlined_call_operand.<no memory space> [shape: f32[1], index: 0, kind: input, shape index: {}]
  %s1 = inlined_call_operand.hbm [shape: f32[8,256], index: 1, kind: input, shape index: {}]
  %s2 = inlined_call_operand.vmem [shape: f32[8,1], index: 2, kind: output, shape index: {}]
  %s3 = sld [smem:[#allocation0]]
  $region22: #{tpu_custom_call.1} parent=0
    _
  %s5 = ssub.s32 1, %s3
  %s6 = scalar_select 0, %s5, %s3
  %7 = sst [smem:[#allocation2]] %s0
  $region1: #{tpu_custom_call.1} parent=0
    #allocation3 [shape = 'u8[8192]{0}', space=vmem, size = 0x2000, scoped, tag = 'input window, operand 1, single buffered']
    #allocation4 [shape = 's32[1]{0}', space=sflag, size = 0x4, scoped, tag = 'scoped memory for tpu_custom_call.1']
    %8 = vsyncpa [#allocation4], 0
    // Predicated region
    $region2: #{tpu_custom_call.1} parent=1 // pred_check
      _
    $region3: #{tpu_custom_call.1} parent=1 // pred_check_branch
      %10 = sbr.rel (0) target = $region5
    $region4: #{tpu_custom_call.1} parent=1 // pred_region
      _
    $region5: #{tpu_custom_call.1} parent=1 // pred_fallthru
      _
    // Predicated region
    $region6: #{tpu_custom_call.1} parent=1 // pred_check
      _
    $region7: #{tpu_custom_call.1} parent=1 // pred_check_branch
      %12 = sbr.rel (0) target = $region9
    $region8: #{tpu_custom_call.1} parent=1 // pred_region
      %14 = vsyncadd [#allocation4], 0
      %s16 = sshll.u32 %s1, 4
      %s17 = int_to_ptr.hbm [resolvable:$true] %s16
      %s18 = sshll.u32 [#allocation3], 4
      %s19 = int_to_ptr.vmem [resolvable:$true] %s18
      %21 = dma.hbm_to_vmem [thread:$0]  %s17, 256, %s19, [#allocation4]
    $region9: #{tpu_custom_call.1} parent=1 // pred_fallthru
      _
    // Predicated region
    $region10: #{tpu_custom_call.1} parent=1 // pred_check
      _
    $region11: #{tpu_custom_call.1} parent=1 // pred_check_branch
      %23 = sbr.rel (0) target = $region13
    $region12: #{tpu_custom_call.1} parent=1 // pred_region
      %25 = dma.done [#allocation4], 256
    $region13: #{tpu_custom_call.1} parent=1 // pred_fallthru
      _
    %s26 = sld [smem:[#allocation2]]
    %v27 = vld [vmem:[#allocation3] sm:$0xff]
    %v28 = vld [vmem:[#allocation3 + $0x8] sm:$0xff]
    %v29 = vmax.f32 %v27, 1e-12
    %v30 = vmax.f32 %v28, 1e-12
    %v31 = vlog2.pop %v29
    %v32 = vmul.f32 %v31, 0.6931472
    %v33 = vlog2.pop %v30
    %v34 = vmul.f32 %v33, 0.6931472
    %v35 = vstv %s26
    %v36 = vmul.f32 %v35, %v32
    %v37 = vmul.f32 %v35, %v34
    %v38 = vmul.f32 %v36, 1.442695
    %v39 = vpow.pop %v38
    %v40 = vmul.f32 %v37, 1.442695
    %v41 = vpow.pop %v40
    %v42 = vadd.f32 %v39, %v41
    %43 = vadd.xlane.f32.xlu0 %v42
    %v44 = vpop.xlane.xlu0 %43
    %v45 = vmul.f32 %v44, 0.00390625
    %v46 = vlog2.pop %v45
    %v47 = vmul.f32 %v46, 0.6931472
    %v48 = vstv %s26
    %v49 = vrcp.pop %v48
    %v50 = vmul.f32 %v48, %v49
    %v51 = vsub.f32 1.0, %v50
    %v52 = vmul.f32 %v49, %v51
    %v53 = vadd.f32 %v49, %v52
    %vm54 = vweird.f32 %v48
    %vm55 = vweird.f32 %v49
    %vm56 = vmor %vm54, %vm55
    %v57 = vsel %vm56, %v49, %v53
    %v58 = vand.u32 2147483647, %v48
    %vm59 = vcmp.eq.f32.partialorder %v58, 8.507059e+37
    %v60 = vand.u32 %v48, 2147483648
    %v61 = vor.u32 1.1754944e-38, %v60
    %v62 = vsel %vm59, %v61, %v57
    %s63 = vtos %v62
    %v64 = vstv %s63
    %v65 = vmul.f32 %v47, %v64
    %v66 = vmul.f32 %v65, 1.442695
    %v67 = vpow.pop %v66
    %vm68 = vcmask 7168
    %69 = vst.msk [vmem:[%s2] sm:$0xff] %vm68, %v67
    // Predicated region
    $region14: #{tpu_custom_call.1} parent=1 // pred_check
      _
    $region15: #{tpu_custom_call.1} parent=1 // pred_check_branch
      %71 = sbr.rel (0) target = $region17
    $region16: #{tpu_custom_call.1} parent=1 // pred_region
      _
    $region17: #{tpu_custom_call.1} parent=1 // pred_fallthru
      _
    // Predicated region
    $region18: #{tpu_custom_call.1} parent=1 // pred_check
      _
    $region19: #{tpu_custom_call.1} parent=1 // pred_check_branch
      %73 = sbr.rel (0) target = $region21
    $region20: #{tpu_custom_call.1} parent=1 // pred_region
      _
    $region21: #{tpu_custom_call.1} parent=1 // pred_fallthru
      _
    %74 = vsyncpa [#allocation4], 1

</llo_original>
